<compile_context>
chip_gen: v5e
topology: v5e:2x2
jax: 0.10.0
libtpu: 0.0.40
codegen_flags: <defaults>
</compile_context>

<pallas_src>
import functools

import jax
import jax.numpy as jnp
from jax.experimental import pallas as pl
from jax.experimental.pallas import tpu as pltpu

INPUT_DIM = 3
H1 = 128
H2 = 64

TB_MAX = 2048   # max batch rows per grid step (DMA tile)


def _round_up(n, m):
    return ((n + m - 1) // m) * m


def _tpu_plan():
    """(h1_dtype, sub, unroll) tuned per TPU generation."""
    try:
        kind = jax.devices()[0].device_kind.lower()
    except Exception:
        kind = ""
    if any(tag in kind for tag in ("v2", "v3", "v4", "v5")):
        # No bf16 VPU path: keep layer-1 math in f32, smaller chunk, no unroll
        # to stay inside the 64-vreg file.
        return jnp.float32, 128, 1
    # v6e / v7x: bf16 VALU available.
    return jnp.bfloat16, 256, 2


def mlp_kernel(xT_ref, w1t_ref, b1_ref, w2t_ref, b2_ref, w3_ref, b3_ref, o_ref,
               *, nsub, sub, unroll):
    """One batch tile: x^T (3, tb) -> o (1, tb) sigmoid probabilities (lane-dense)."""
    # Hoist all loop-invariant loads / broadcasts out of the sub-chunk loop.
    w1c0 = w1t_ref[:, 0:1]                              # (128, 1)  h1 dtype
    w1c1 = w1t_ref[:, 1:2]
    w1c2 = w1t_ref[:, 2:3]
    b1 = b1_ref[...]                                    # (128, 1)  h1 dtype
    w2t = w2t_ref[...]                                  # (64, 128) bf16
    b2 = jnp.broadcast_to(b2_ref[...], (H2, sub))       # (64, sub) f32, hoisted
    w3 = w3_ref[...]                                    # (64, 1)   f32
    b3 = b3_ref[0, 0]                                   # scalar (SMEM)
    h1_dtype = w1t_ref.dtype

    def body(c, carry):
        r0 = pl.multiple_of(c * sub, sub)
        xs = xT_ref[:, pl.ds(r0, sub)].astype(h1_dtype)          # (3, sub)

        # Layer 1 (K=3): VPU broadcast MACs, feature-major (128, sub) result.
        h1 = (w1c0 * xs[0:1, :] + w1c1 * xs[1:2, :]
              + w1c2 * xs[2:3, :] + b1)
        h1 = jnp.maximum(h1, 0.0)                                # (128, sub)

        # Dropout(0.3): identity in eval/inference mode.
        # TODO(synk): training-mode dropout (mask + 1/(1-p) scaling) not implemented.

        # Layer 2 (K=128): the only real matmul -> MXU, bf16 operands, f32 acc.
        # Layout-native LHS(M,K) @ RHS(K,N): no activation transpose needed.
        h2t = jax.lax.dot_general(
            w2t, h1.astype(jnp.bfloat16),
            dimension_numbers=(((1,), (0,)), ((), ())),
            preferred_element_type=jnp.float32) + b2             # (64, sub) f32
        h2t = jnp.maximum(h2t, 0.0)

        # Layer 3 (N=1): VPU multiply + sublane reduction instead of an MXU pass.
        logits = jnp.sum(h2t * w3, axis=0, keepdims=True) + b3   # (1, sub)
        o_ref[:, pl.ds(r0, sub)] = jax.nn.sigmoid(logits)
        return carry

    jax.lax.fori_loop(0, nsub, body, 0, unroll=unroll)


def anomaly_classifier(x, params):
    """x: (B, 3) float32 -> (B, 1) float32 probabilities (eval-mode forward)."""
    w1, b1, w2, b2, w3, b3 = params
    B = x.shape[0]

    h1_dtype, sub_pref, unroll_pref = _tpu_plan()

    # Pick the batch tile: large enough to amortize per-grid-step overhead, lane
    # aligned (multiple of 128), split into sub-row chunks inside the kernel so
    # activations stay register-resident; >= 2 tiles when B is moderate so both
    # v7x TensorCores are used (no-op on v5e/v6e).
    if B <= 128:
        tb, sub = 128, 128
    else:
        target = _round_up((B + 1) // 2, sub_pref)
        tb = max(sub_pref, min(TB_MAX, target))
        sub = sub_pref
    nsub = tb // sub
    unroll = max(1, min(unroll_pref, nsub))
    n_tiles = pl.cdiv(B, tb)      # trailing partial block handled by Pallas

    # One-time tiny re-layouts (weights + a single small transpose of x).
    xT = x.T                                     # (3, B)   lane-dense input
    w1t = w1.T.astype(h1_dtype)                  # (128, 3)
    b1c = b1.reshape(H1, 1).astype(h1_dtype)     # (128, 1)
    w2t = w2.T.astype(jnp.bfloat16)              # (64, 128) bf16 MXU operand
    b2c = b2.reshape(H2, 1)                      # (64, 1)
    w3c = w3.reshape(H2, 1)                      # (64, 1)
    b3s = b3.reshape(1, 1)                       # scalar -> SMEM

    kernel = functools.partial(mlp_kernel, nsub=nsub, sub=sub, unroll=unroll)

    out = pl.pallas_call(
        kernel,
        out_shape=jax.ShapeDtypeStruct((n_tiles, 1, tb), jnp.float32),
        grid_spec=pltpu.PrefetchScalarGridSpec(
            num_scalar_prefetch=0,
            grid=(n_tiles,),
            in_specs=[
                pl.BlockSpec((INPUT_DIM, tb), lambda i: (0, i)),    # x^T tile
                pl.BlockSpec((H1, INPUT_DIM), lambda i: (0, 0)),    # W1^T (128,3)
                pl.BlockSpec((H1, 1), lambda i: (0, 0)),            # b1 (128,1)
                pl.BlockSpec((H2, H1), lambda i: (0, 0)),           # W2^T (64,128) bf16
                pl.BlockSpec((H2, 1), lambda i: (0, 0)),            # b2 (64,1)
                pl.BlockSpec((H2, 1), lambda i: (0, 0)),            # w3 (64,1)
                pl.BlockSpec(memory_space=pltpu.MemorySpace.SMEM),  # b3 scalar
            ],
            out_specs=pl.BlockSpec((None, 1, tb), lambda i: (i, 0, 0)),
        ),
        compiler_params=pltpu.CompilerParams(
            dimension_semantics=("parallel",)),
    )(xT, w1t, b1c, w2t, b2c, w3c, b3s)

    # (n_tiles, 1, tb) lane-dense rows -> (B, 1) column; padded tail dropped.
    return out.reshape(n_tiles * tb)[:B].reshape(B, 1)


def init_params(key):
    """Deterministic init mimicking PyTorch nn.Linear default (U[-1/sqrt(fan_in), +])."""
    ks = jax.random.split(key, 6)

    def linear(kw, kb, fan_in, fan_out):
        bound = 1.0 / jnp.sqrt(float(fan_in))
        w = jax.random.uniform(kw, (fan_in, fan_out), jnp.float32, -bound, bound)
        b = jax.random.uniform(kb, (1, fan_out), jnp.float32, -bound, bound)
        return w, b

    w1, b1 = linear(ks[0], ks[1], INPUT_DIM, H1)
    w2, b2 = linear(ks[2], ks[3], H1, H2)
    w3, b3 = linear(ks[4], ks[5], H2, 1)
    return (w1, b1, w2, b2, w3, b3)


def _reference_f32(x, params):
    """Plain f32 forward pass matching the PyTorch module in eval mode."""
    w1, b1, w2, b2, w3, b3 = params
    h1 = jnp.maximum(x @ w1 + b1, 0.0)
    h2 = jnp.maximum(h1 @ w2 + b2, 0.0)
    return jax.nn.sigmoid(h2 @ w3 + b3)


def _reference_matched(x, params, h1_dtype):
    """Reference mirroring the kernel's math (same dtypes / orientation)."""
    w1, b1, w2, b2, w3, b3 = params
    xT = x.T.astype(h1_dtype)                              # (3, B)
    w1t = w1.T.astype(h1_dtype)                            # (128, 3)
    b1c = b1.reshape(H1, 1).astype(h1_dtype)
    h1 = (w1t[:, 0:1] * xT[0:1, :] + w1t[:, 1:2] * xT[1:2, :]
          + w1t[:, 2:3] * xT[2:3, :] + b1c)
    h1 = jnp.maximum(h1, 0.0)
    h2t = jax.lax.dot_general(
        w2.T.astype(jnp.bfloat16), h1.astype(jnp.bfloat16),
        dimension_numbers=(((1,), (0,)), ((), ())),
        preferred_element_type=jnp.float32) + b2.reshape(H2, 1)
    h2t = jnp.maximum(h2t, 0.0)
    logits = jnp.sum(h2t * w3.reshape(H2, 1), axis=0, keepdims=True) + b3[0, 0]
    return jax.nn.sigmoid(logits).T


if __name__ == "__main__":
    key = jax.random.PRNGKey(0)
    kx, kp = jax.random.split(key)
    params = init_params(kp)
    h1_dtype, _, _ = _tpu_plan()

    # Small demo batch (single 128-lane tile, single sub-chunk).
    B0 = 8
    x0 = jax.random.normal(kx, (B0, INPUT_DIM), jnp.float32)
    out0 = jax.block_until_ready(anomaly_classifier(x0, params))
    assert out0.shape == (B0, 1)
    assert jnp.allclose(out0, _reference_matched(x0, params, h1_dtype), atol=1e-3, rtol=0)
    assert jnp.allclose(out0, _reference_f32(x0, params), atol=5e-3, rtol=0)

    # Larger batch: exercises the multi-tile grid (>=2 tiles), the sub-chunk loop,
    # and the ragged trailing block (no wrapper-side padding copy of x).
    B1 = 600
    x1 = jax.random.normal(kx, (B1, INPUT_DIM), jnp.float32)
    out1 = jax.block_until_ready(anomaly_classifier(x1, params))
    assert out1.shape == (B1, 1)
    assert jnp.allclose(out1, _reference_matched(x1, params, h1_dtype), atol=1e-3, rtol=0)
    assert jnp.allclose(out1, _reference_f32(x1, params), atol=5e-3, rtol=0)

    print("KERNEL_OK")
</pallas_src>

<mosaic_0001>
module attributes {stable_mosaic.version = 11 : i64} {
  func.func @mlp_kernel(%arg0: i32, %arg1: memref<3x128xf32, #tpu.memory_space<vmem>>, %arg2: memref<128x3xbf16, #tpu.memory_space<vmem>>, %arg3: memref<128x1xbf16, #tpu.memory_space<vmem>>, %arg4: memref<64x128xbf16, #tpu.memory_space<vmem>>, %arg5: memref<64x1xf32, #tpu.memory_space<vmem>>, %arg6: memref<64x1xf32, #tpu.memory_space<vmem>>, %arg7: memref<1x1xf32, #tpu.memory_space<smem>>, %arg8: memref<1x1x128xf32, #tpu.memory_space<vmem>>) attributes {dimension_semantics = [#tpu.dimension_semantics<parallel>], iteration_bounds = array<i64: 1>, scalar_prefetch = 0 : i64, scratch_operands = 0 : i64, tpu.core_type = #tpu.core_type<tc>, window_params = [{transform_indices = @transform_0, window_bounds = array<i64: 3, 128>}, {pipeline_mode = #tpu.pipeline_mode<synchronous>, transform_indices = @transform_1, window_bounds = array<i64: 128, 3>}, {pipeline_mode = #tpu.pipeline_mode<synchronous>, transform_indices = @transform_2, window_bounds = array<i64: 128, 1>}, {pipeline_mode = #tpu.pipeline_mode<synchronous>, transform_indices = @transform_3, window_bounds = array<i64: 64, 128>}, {pipeline_mode = #tpu.pipeline_mode<synchronous>, transform_indices = @transform_4, window_bounds = array<i64: 64, 1>}, {pipeline_mode = #tpu.pipeline_mode<synchronous>, transform_indices = @transform_5, window_bounds = array<i64: 64, 1>}, {transform_indices = @transform_6, window_bounds = array<i64: 1, 1>}, {transform_indices = @transform_7, window_bounds = array<i64: 1, 1, 128>}]} {
    %c0 = arith.constant 0 : index
    %c0_0 = arith.constant 0 : index
    %0 = vector.load %arg2[%c0, %c0_0] : memref<128x3xbf16, #tpu.memory_space<vmem>>, vector<128x1xbf16>
    %c0_1 = arith.constant 0 : index
    %c1 = arith.constant 1 : index
    %1 = vector.load %arg2[%c0_1, %c1] : memref<128x3xbf16, #tpu.memory_space<vmem>>, vector<128x1xbf16>
    %c0_2 = arith.constant 0 : index
    %c2 = arith.constant 2 : index
    %2 = vector.load %arg2[%c0_2, %c2] : memref<128x3xbf16, #tpu.memory_space<vmem>>, vector<128x1xbf16>
    %c0_3 = arith.constant 0 : index
    %c0_4 = arith.constant 0 : index
    %3 = vector.load %arg3[%c0_3, %c0_4] : memref<128x1xbf16, #tpu.memory_space<vmem>>, vector<128x1xbf16>
    %c0_5 = arith.constant 0 : index
    %c0_6 = arith.constant 0 : index
    %4 = vector.load %arg4[%c0_5, %c0_6] : memref<64x128xbf16, #tpu.memory_space<vmem>>, vector<64x128xbf16>
    %c0_7 = arith.constant 0 : index
    %c0_8 = arith.constant 0 : index
    %5 = vector.load %arg5[%c0_7, %c0_8] : memref<64x1xf32, #tpu.memory_space<vmem>>, vector<64x1xf32>
    %6 = vector.shape_cast %5 : vector<64x1xf32> to vector<64x1xf32>
    %7 = vector.broadcast %6 : vector<64x1xf32> to vector<64x128xf32>
    %c0_9 = arith.constant 0 : index
    %c0_10 = arith.constant 0 : index
    %8 = vector.load %arg6[%c0_9, %c0_10] : memref<64x1xf32, #tpu.memory_space<vmem>>, vector<64x1xf32>
    %c0_11 = arith.constant 0 : index
    %c0_12 = arith.constant 0 : index
    %9 = memref.load %arg7[%c0_11, %c0_12] : memref<1x1xf32, #tpu.memory_space<smem>>
    %c0_i32 = arith.constant 0 : i32
    %c128_i32 = arith.constant 128 : i32
    %10 = arith.muli %c0_i32, %c128_i32 : i32
    %11 = tpu.assume_multiple %10, 128 : i32
    %c0_13 = arith.constant 0 : index
    %12 = arith.index_cast %11 : i32 to index
    %13 = vector.load %arg1[%c0_13, %12] : memref<3x128xf32, #tpu.memory_space<vmem>>, vector<3x128xf32>
    %14 = arith.truncf %13 : vector<3x128xf32> to vector<3x128xbf16>
    %15 = vector.extract_strided_slice %14 {offsets = [0, 0], sizes = [1, 128], strides = [1, 1]} : vector<3x128xbf16> to vector<1x128xbf16>
    %16 = vector.broadcast %0 : vector<128x1xbf16> to vector<128x128xbf16>
    %17 = vector.broadcast %15 : vector<1x128xbf16> to vector<128x128xbf16>
    %18 = arith.mulf %16, %17 : vector<128x128xbf16>
    %19 = vector.extract_strided_slice %14 {offsets = [1, 0], sizes = [1, 128], strides = [1, 1]} : vector<3x128xbf16> to vector<1x128xbf16>
    %20 = vector.broadcast %1 : vector<128x1xbf16> to vector<128x128xbf16>
    %21 = vector.broadcast %19 : vector<1x128xbf16> to vector<128x128xbf16>
    %22 = arith.mulf %20, %21 : vector<128x128xbf16>
    %23 = arith.addf %18, %22 : vector<128x128xbf16>
    %24 = vector.extract_strided_slice %14 {offsets = [2, 0], sizes = [1, 128], strides = [1, 1]} : vector<3x128xbf16> to vector<1x128xbf16>
    %25 = vector.broadcast %2 : vector<128x1xbf16> to vector<128x128xbf16>
    %26 = vector.broadcast %24 : vector<1x128xbf16> to vector<128x128xbf16>
    %27 = arith.mulf %25, %26 : vector<128x128xbf16>
    %28 = arith.addf %23, %27 : vector<128x128xbf16>
    %29 = vector.broadcast %3 : vector<128x1xbf16> to vector<128x128xbf16>
    %30 = arith.addf %28, %29 : vector<128x128xbf16>
    %cst = arith.constant 0.000000e+00 : bf16
    %31 = vector.broadcast %cst : bf16 to vector<128x128xbf16>
    %32 = arith.maximumf %30, %31 : vector<128x128xbf16>
    %cst_14 = arith.constant dense<0.000000e+00> : vector<64x128xf32>
    %33 = tpu.matmul %4, %32, %cst_14 {dimension_numbers = #tpu.dot_dimension_numbers<[1], [0], [0], [1], [0, 0, 1, 1], [], []>} : vector<64x128xbf16>, vector<128x128xbf16>, vector<64x128xf32> -> vector<64x128xf32>
    %34 = arith.addf %33, %7 : vector<64x128xf32>
    %cst_15 = arith.constant 0.000000e+00 : f32
    %35 = vector.broadcast %cst_15 : f32 to vector<64x128xf32>
    %36 = arith.maximumf %34, %35 : vector<64x128xf32>
    %37 = vector.broadcast %8 : vector<64x1xf32> to vector<64x128xf32>
    %38 = arith.mulf %36, %37 : vector<64x128xf32>
    %cst_16 = arith.constant dense<0.000000e+00> : vector<128xf32>
    %39 = vector.multi_reduction <add>, %38, %cst_16 [0] : vector<64x128xf32> to vector<128xf32>
    %40 = vector.shape_cast %39 : vector<128xf32> to vector<1x128xf32>
    %41 = vector.broadcast %9 : f32 to vector<1x128xf32>
    %42 = arith.addf %40, %41 : vector<1x128xf32>
    %43 = arith.negf %42 : vector<1x128xf32>
    %44 = math.exp %43 : vector<1x128xf32>
    %cst_17 = arith.constant 1.000000e+00 : f32
    %45 = vector.broadcast %cst_17 : f32 to vector<1x128xf32>
    %46 = arith.addf %45, %44 : vector<1x128xf32>
    %47 = arith.divf %45, %46 : vector<1x128xf32>
    %c0_18 = arith.constant 0 : index
    %c0_19 = arith.constant 0 : index
    %48 = arith.index_cast %11 : i32 to index
    %49 = vector.load %arg8[%c0_18, %c0_19, %48] : memref<1x1x128xf32, #tpu.memory_space<vmem>>, vector<1x1x128xf32>
    %50 = vector.shape_cast %49 : vector<1x1x128xf32> to vector<1x128xf32>
    %51 = vector.shape_cast %47 : vector<1x128xf32> to vector<1x1x128xf32>
    tpu.vector_store %arg8[%c0_18, %c0_19, %48], %51 {strides = array<i32>} : memref<1x1x128xf32, #tpu.memory_space<vmem>>, vector<1x1x128xf32>,
    %c1_i32 = arith.constant 1 : i32
    return
  }
  func.func @transform_0(%arg0: i32) -> (i32, i32) {
    %c0_i32 = arith.constant 0 : i32
    %c0_i32_0 = arith.constant 0 : i32
    return %c0_i32, %arg0 : i32, i32
  }
  func.func @transform_1(%arg0: i32) -> (i32, i32) {
    %c0_i32 = arith.constant 0 : i32
    %c0_i32_0 = arith.constant 0 : i32
    %c0_i32_1 = arith.constant 0 : i32
    return %c0_i32, %c0_i32_0 : i32, i32
  }
  func.func @transform_2(%arg0: i32) -> (i32, i32) {
    %c0_i32 = arith.constant 0 : i32
    %c0_i32_0 = arith.constant 0 : i32
    %c0_i32_1 = arith.constant 0 : i32
    return %c0_i32, %c0_i32_0 : i32, i32
  }
  func.func @transform_3(%arg0: i32) -> (i32, i32) {
    %c0_i32 = arith.constant 0 : i32
    %c0_i32_0 = arith.constant 0 : i32
    %c0_i32_1 = arith.constant 0 : i32
    return %c0_i32, %c0_i32_0 : i32, i32
  }
  func.func @transform_4(%arg0: i32) -> (i32, i32) {
    %c0_i32 = arith.constant 0 : i32
    %c0_i32_0 = arith.constant 0 : i32
    %c0_i32_1 = arith.constant 0 : i32
    return %c0_i32, %c0_i32_0 : i32, i32
  }
  func.func @transform_5(%arg0: i32) -> (i32, i32) {
    %c0_i32 = arith.constant 0 : i32
    %c0_i32_0 = arith.constant 0 : i32
    %c0_i32_1 = arith.constant 0 : i32
    return %c0_i32, %c0_i32_0 : i32, i32
  }
  func.func @transform_6(%arg0: i32) -> (i32, i32) {
    %c0_i32 = arith.constant 0 : i32
    %c0_i32_0 = arith.constant 0 : i32
    %c0_i32_1 = arith.constant 0 : i32
    return %c0_i32, %c0_i32_0 : i32, i32
  }
  func.func @transform_7(%arg0: i32) -> (i32, i32, i32) {
    %c0_i32 = arith.constant 0 : i32
    %c0_i32_0 = arith.constant 0 : i32
    %c0_i32_1 = arith.constant 0 : i32
    return %arg0, %c0_i32, %c0_i32_0 : i32, i32, i32
  }
}

</mosaic_0001>

<llo_original>
// kernel: tpu_custom_call.1
$region0: #{tpu_custom_call.1}
  #allocation0 [shape = 'u32[]', space=smem, size = 0x4, offset = 0x4, fixed_abs, tag = 'smem constant byte address 0x4 - core index']
  #allocation1 [shape = 'u32[72,128]{1,0:T(1,128)}', space=vmem, size = 0x9000, scoped, tag = 'internal scratch']
  #allocation2 [shape = 'f32[1,1]{1,0:T(1,128)S(6)}', space=smem, size = 0x200, scoped, tag = 'scoped memory for tpu_custom_call.1']
  %s0 = inlined_call_operand.vmem [shape: f32[3,8], index: 0, kind: input, shape index: {}]
  %s1 = inlined_call_operand.vmem [shape: bf16[128,3], index: 1, kind: input, shape index: {}]
  %s2 = inlined_call_operand.vmem [shape: bf16[128,1], index: 2, kind: input, shape index: {}]
  %s3 = inlined_call_operand.vmem [shape: bf16[64,128], index: 3, kind: input, shape index: {}]
  %s4 = inlined_call_operand.vmem [shape: f32[64,1], index: 4, kind: input, shape index: {}]
  %s5 = inlined_call_operand.vmem [shape: f32[64,1], index: 5, kind: input, shape index: {}]
  %s6 = inlined_call_operand.<no memory space> [shape: f32[1,1], index: 6, kind: input, shape index: {}]
  %s7 = inlined_call_operand.hbm [shape: f32[1,1,128], index: 7, kind: output, shape index: {}]
  %s8 = sld [smem:[#allocation0]]
  $region38: #{tpu_custom_call.1} parent=0
    _
  %s10 = ssub.s32 1, %s8
  %s11 = scalar_select 0, %s10, %s8
  %12 = sst [smem:[#allocation2]] %s6
  $region1: #{tpu_custom_call.1} parent=0
    #allocation3 [shape = 'u8[512]{0}', space=vmem, size = 0x400, scoped, tag = 'output window, operand 0, single buffered']
    #allocation4 [shape = 's32[1]{0}', space=sflag, size = 0x4, scoped, tag = 'scoped memory for tpu_custom_call.1']
    %13 = vsyncpa [#allocation4], 0
    // Predicated region
    $region2: #{tpu_custom_call.1} parent=1 // pred_check
      _
    $region3: #{tpu_custom_call.1} parent=1 // pred_check_branch
      %15 = sbr.rel (0) target = $region5
    $region4: #{tpu_custom_call.1} parent=1 // pred_region
      _
    $region5: #{tpu_custom_call.1} parent=1 // pred_fallthru
      _
    // Predicated region
    $region6: #{tpu_custom_call.1} parent=1 // pred_check
      _
    $region7: #{tpu_custom_call.1} parent=1 // pred_check_branch
      %17 = sbr.rel (0) target = $region9
    $region8: #{tpu_custom_call.1} parent=1 // pred_region
      _
    $region9: #{tpu_custom_call.1} parent=1 // pred_fallthru
      _
    // Predicated region
    $region10: #{tpu_custom_call.1} parent=1 // pred_check
      _
    $region11: #{tpu_custom_call.1} parent=1 // pred_check_branch
      %19 = sbr.rel (0) target = $region13
    $region12: #{tpu_custom_call.1} parent=1 // pred_region
      _
    $region13: #{tpu_custom_call.1} parent=1 // pred_fallthru
      _
    // Predicated region
    $region14: #{tpu_custom_call.1} parent=1 // pred_check
      _
    $region15: #{tpu_custom_call.1} parent=1 // pred_check_branch
      %21 = sbr.rel (0) target = $region17
    $region16: #{tpu_custom_call.1} parent=1 // pred_region
      _
    $region17: #{tpu_custom_call.1} parent=1 // pred_fallthru
      _
    // Predicated region
    $region18: #{tpu_custom_call.1} parent=1 // pred_check
      _
    $region19: #{tpu_custom_call.1} parent=1 // pred_check_branch
      %23 = sbr.rel (0) target = $region21
    $region20: #{tpu_custom_call.1} parent=1 // pred_region
      _
    $region21: #{tpu_custom_call.1} parent=1 // pred_fallthru
      _
    // Predicated region
    $region22: #{tpu_custom_call.1} parent=1 // pred_check
      _
    $region23: #{tpu_custom_call.1} parent=1 // pred_check_branch
      %25 = sbr.rel (0) target = $region25
    $region24: #{tpu_custom_call.1} parent=1 // pred_region
      _
    $region25: #{tpu_custom_call.1} parent=1 // pred_fallthru
      _
    // Predicated region
    $region26: #{tpu_custom_call.1} parent=1 // pred_check
      _
    $region27: #{tpu_custom_call.1} parent=1 // pred_check_branch
      %27 = sbr.rel (0) target = $region29
    $region28: #{tpu_custom_call.1} parent=1 // pred_region
      _
    $region29: #{tpu_custom_call.1} parent=1 // pred_fallthru
      _
    %v28 = vld [vmem:[%s1] sm:$0xf]
    %v29 = vld [vmem:[%s1 + $0x4] sm:$0xf]
    %v30 = vld [vmem:[%s1 + $0x8] sm:$0xf]
    %v31 = vld [vmem:[%s1 + $0xc] sm:$0xf]
    %v32 = vld [vmem:[%s1 + $0x10] sm:$0xf]
    %v33 = vld [vmem:[%s1 + $0x14] sm:$0xf]
    %v34 = vld [vmem:[%s1 + $0x18] sm:$0xf]
    %v35 = vld [vmem:[%s1 + $0x1c] sm:$0xf]
    %v36 = vld [vmem:[%s1 + $0x20] sm:$0xf]
    %v37 = vld [vmem:[%s1 + $0x24] sm:$0xf]
    %v38 = vld [vmem:[%s1 + $0x28] sm:$0xf]
    %v39 = vld [vmem:[%s1 + $0x2c] sm:$0xf]
    %v40 = vld [vmem:[%s1 + $0x30] sm:$0xf]
    %v41 = vld [vmem:[%s1 + $0x34] sm:$0xf]
    %v42 = vld [vmem:[%s1 + $0x38] sm:$0xf]
    %v43 = vld [vmem:[%s1 + $0x3c] sm:$0xf]
    %v44 = vld [vmem:[%s2] sm:$0xf]
    %v45 = vld [vmem:[%s2 + $0x4] sm:$0xf]
    %v46 = vld [vmem:[%s2 + $0x8] sm:$0xf]
    %v47 = vld [vmem:[%s2 + $0xc] sm:$0xf]
    %v48 = vld [vmem:[%s2 + $0x10] sm:$0xf]
    %v49 = vld [vmem:[%s2 + $0x14] sm:$0xf]
    %v50 = vld [vmem:[%s2 + $0x18] sm:$0xf]
    %v51 = vld [vmem:[%s2 + $0x1c] sm:$0xf]
    %v52 = vld [vmem:[%s2 + $0x20] sm:$0xf]
    %v53 = vld [vmem:[%s2 + $0x24] sm:$0xf]
    %v54 = vld [vmem:[%s2 + $0x28] sm:$0xf]
    %v55 = vld [vmem:[%s2 + $0x2c] sm:$0xf]
    %v56 = vld [vmem:[%s2 + $0x30] sm:$0xf]
    %v57 = vld [vmem:[%s2 + $0x34] sm:$0xf]
    %v58 = vld [vmem:[%s2 + $0x38] sm:$0xf]
    %v59 = vld [vmem:[%s2 + $0x3c] sm:$0xf]
    %v60 = vld [vmem:[%s3] sm:$0xf]
    %v61 = vld [vmem:[%s3 + $0x4] sm:$0xf]
    %v62 = vld [vmem:[%s3 + $0x8] sm:$0xf]
    %v63 = vld [vmem:[%s3 + $0xc] sm:$0xf]
    %v64 = vld [vmem:[%s3 + $0x10] sm:$0xf]
    %v65 = vld [vmem:[%s3 + $0x14] sm:$0xf]
    %v66 = vld [vmem:[%s3 + $0x18] sm:$0xf]
    %v67 = vld [vmem:[%s3 + $0x1c] sm:$0xf]
    %v68 = vld [vmem:[%s4] sm:$0xff]
    %v69 = vld [vmem:[%s4 + $0x8] sm:$0xff]
    %v70 = vld [vmem:[%s4 + $0x10] sm:$0xff]
    %v71 = vld [vmem:[%s4 + $0x18] sm:$0xff]
    %v72 = vld [vmem:[%s4 + $0x20] sm:$0xff]
    %v73 = vld [vmem:[%s4 + $0x28] sm:$0xff]
    %v74 = vld [vmem:[%s4 + $0x30] sm:$0xff]
    %v75 = vld [vmem:[%s4 + $0x38] sm:$0xff]
    %77 = vset.pattern.permute.xlu0 0
    %78 = vperm.xlu0 %77, %v68
    %v79 = vpop.permute.xlu0 %78
    %82 = vset.pattern.permute.xlu0 0
    %83 = vperm.xlu0 %82, %v69
    %v84 = vpop.permute.xlu0 %83
    %87 = vset.pattern.permute.xlu0 0
    %88 = vperm.xlu0 %87, %v70
    %v89 = vpop.permute.xlu0 %88
    %92 = vset.pattern.permute.xlu0 0
    %93 = vperm.xlu0 %92, %v71
    %v94 = vpop.permute.xlu0 %93
    %97 = vset.pattern.permute.xlu0 0
    %98 = vperm.xlu0 %97, %v72
    %v99 = vpop.permute.xlu0 %98
    %102 = vset.pattern.permute.xlu0 0
    %103 = vperm.xlu0 %102, %v73
    %v104 = vpop.permute.xlu0 %103
    %107 = vset.pattern.permute.xlu0 0
    %108 = vperm.xlu0 %107, %v74
    %v109 = vpop.permute.xlu0 %108
    %112 = vset.pattern.permute.xlu0 0
    %113 = vperm.xlu0 %112, %v75
    %v114 = vpop.permute.xlu0 %113
    %v116 = vld [vmem:[%s5] sm:$0xff]
    %v117 = vld [vmem:[%s5 + $0x8] sm:$0xff]
    %v118 = vld [vmem:[%s5 + $0x10] sm:$0xff]
    %v119 = vld [vmem:[%s5 + $0x18] sm:$0xff]
    %v120 = vld [vmem:[%s5 + $0x20] sm:$0xff]
    %v121 = vld [vmem:[%s5 + $0x28] sm:$0xff]
    %v122 = vld [vmem:[%s5 + $0x30] sm:$0xff]
    %v123 = vld [vmem:[%s5 + $0x38] sm:$0xff]
    %s124 = sld [smem:[#allocation2]]
    %v125 = vld [vmem:[%s0] sm:$0x7]
    %v126 = vpack.c.bf16 %v125, %v125
    %128 = vset.pattern.permute.xlu0 0
    %129 = vperm.xlu0 %128, %v28
    %v130 = vpop.permute.xlu0 %129
    %v133 = vunpack.c.l.s4 839922192
    %v134 = vunpack.c.0.s8 %v133
    %v135 = vperm.slane %v130, %v134
    %137 = vset.pattern.permute.xlu0 0
    %138 = vperm.xlu0 %137, %v29
    %v139 = vpop.permute.xlu0 %138
    %v142 = vunpack.c.l.s4 839922192
    %v143 = vunpack.c.0.s8 %v142
    %v144 = vperm.slane %v139, %v143
    %146 = vset.pattern.permute.xlu0 0
    %147 = vperm.xlu0 %146, %v30
    %v148 = vpop.permute.xlu0 %147
    %v151 = vunpack.c.l.s4 839922192
    %v152 = vunpack.c.0.s8 %v151
    %v153 = vperm.slane %v148, %v152
    %155 = vset.pattern.permute.xlu0 0
    %156 = vperm.xlu0 %155, %v31
    %v157 = vpop.permute.xlu0 %156
    %v160 = vunpack.c.l.s4 839922192
    %v161 = vunpack.c.0.s8 %v160
    %v162 = vperm.slane %v157, %v161
    %164 = vset.pattern.permute.xlu0 0
    %165 = vperm.xlu0 %164, %v32
    %v166 = vpop.permute.xlu0 %165
    %v169 = vunpack.c.l.s4 839922192
    %v170 = vunpack.c.0.s8 %v169
    %v171 = vperm.slane %v166, %v170
    %173 = vset.pattern.permute.xlu0 0
    %174 = vperm.xlu0 %173, %v33
    %v175 = vpop.permute.xlu0 %174
    %v178 = vunpack.c.l.s4 839922192
    %v179 = vunpack.c.0.s8 %v178
    %v180 = vperm.slane %v175, %v179
    %182 = vset.pattern.permute.xlu0 0
    %183 = vperm.xlu0 %182, %v34
    %v184 = vpop.permute.xlu0 %183
    %v187 = vunpack.c.l.s4 839922192
    %v188 = vunpack.c.0.s8 %v187
    %v189 = vperm.slane %v184, %v188
    %191 = vset.pattern.permute.xlu0 0
    %192 = vperm.xlu0 %191, %v35
    %v193 = vpop.permute.xlu0 %192
    %v196 = vunpack.c.l.s4 839922192
    %v197 = vunpack.c.0.s8 %v196
    %v198 = vperm.slane %v193, %v197
    %200 = vset.pattern.permute.xlu0 0
    %201 = vperm.xlu0 %200, %v36
    %v202 = vpop.permute.xlu0 %201
    %v205 = vunpack.c.l.s4 839922192
    %v206 = vunpack.c.0.s8 %v205
    %v207 = vperm.slane %v202, %v206
    %209 = vset.pattern.permute.xlu0 0
    %210 = vperm.xlu0 %209, %v37
    %v211 = vpop.permute.xlu0 %210
    %v214 = vunpack.c.l.s4 839922192
    %v215 = vunpack.c.0.s8 %v214
    %v216 = vperm.slane %v211, %v215
    %218 = vset.pattern.permute.xlu0 0
    %219 = vperm.xlu0 %218, %v38
    %v220 = vpop.permute.xlu0 %219
    %v223 = vunpack.c.l.s4 839922192
    %v224 = vunpack.c.0.s8 %v223
    %v225 = vperm.slane %v220, %v224
    %227 = vset.pattern.permute.xlu0 0
    %228 = vperm.xlu0 %227, %v39
    %v229 = vpop.permute.xlu0 %228
    %v232 = vunpack.c.l.s4 839922192
    %v233 = vunpack.c.0.s8 %v232
    %v234 = vperm.slane %v229, %v233
    %236 = vset.pattern.permute.xlu0 0
    %237 = vperm.xlu0 %236, %v40
    %v238 = vpop.permute.xlu0 %237
    %v241 = vunpack.c.l.s4 839922192
    %v242 = vunpack.c.0.s8 %v241
    %v243 = vperm.slane %v238, %v242
    %245 = vset.pattern.permute.xlu0 0
    %246 = vperm.xlu0 %245, %v41
    %v247 = vpop.permute.xlu0 %246
    %v250 = vunpack.c.l.s4 839922192
    %v251 = vunpack.c.0.s8 %v250
    %v252 = vperm.slane %v247, %v251
    %254 = vset.pattern.permute.xlu0 0
    %255 = vperm.xlu0 %254, %v42
    %v256 = vpop.permute.xlu0 %255
    %v259 = vunpack.c.l.s4 839922192
    %v260 = vunpack.c.0.s8 %v259
    %v261 = vperm.slane %v256, %v260
    %263 = vset.pattern.permute.xlu0 0
    %264 = vperm.xlu0 %263, %v43
    %v265 = vpop.permute.xlu0 %264
    %v268 = vunpack.c.l.s4 839922192
    %v269 = vunpack.c.0.s8 %v268
    %v270 = vperm.slane %v265, %v269
    %v272 = vpack.i.b16 %v126, %v126
    %v274 = vperm.slane %v272, 0
    %v275 = vunpack.c.l.bf16 %v135
    %v276 = vunpack.c.l.bf16 %v144
    %v277 = vunpack.c.l.bf16 %v153
    %v278 = vunpack.c.l.bf16 %v162
    %v279 = vunpack.c.l.bf16 %v171
    %v280 = vunpack.c.l.bf16 %v180
    %v281 = vunpack.c.l.bf16 %v189
    %v282 = vunpack.c.l.bf16 %v198
    %v283 = vunpack.c.l.bf16 %v207
    %v284 = vunpack.c.l.bf16 %v216
    %v285 = vunpack.c.l.bf16 %v225
    %v286 = vunpack.c.l.bf16 %v234
    %v287 = vunpack.c.l.bf16 %v243
    %v288 = vunpack.c.l.bf16 %v252
    %v289 = vunpack.c.l.bf16 %v261
    %v290 = vunpack.c.l.bf16 %v270
    %v291 = vunpack.c.l.bf16 %v274
    %v292 = vmul.f32 %v275, %v291
    %v293 = vmul.f32 %v276, %v291
    %v294 = vmul.f32 %v277, %v291
    %v295 = vmul.f32 %v278, %v291
    %v296 = vmul.f32 %v279, %v291
    %v297 = vmul.f32 %v280, %v291
    %v298 = vmul.f32 %v281, %v291
    %v299 = vmul.f32 %v282, %v291
    %v300 = vmul.f32 %v283, %v291
    %v301 = vmul.f32 %v284, %v291
    %v302 = vmul.f32 %v285, %v291
    %v303 = vmul.f32 %v286, %v291
    %v304 = vmul.f32 %v287, %v291
    %v305 = vmul.f32 %v288, %v291
    %v306 = vmul.f32 %v289, %v291
    %v307 = vmul.f32 %v290, %v291
    %v308 = vpack.c.bf16 %v292, %v292
    %v309 = vpack.c.bf16 %v293, %v293
    %v310 = vpack.c.bf16 %v294, %v294
    %v311 = vpack.c.bf16 %v295, %v295
    %v312 = vpack.c.bf16 %v296, %v296
    %v313 = vpack.c.bf16 %v297, %v297
    %v314 = vpack.c.bf16 %v298, %v298
    %v315 = vpack.c.bf16 %v299, %v299
    %v316 = vpack.c.bf16 %v300, %v300
    %v317 = vpack.c.bf16 %v301, %v301
    %v318 = vpack.c.bf16 %v302, %v302
    %v319 = vpack.c.bf16 %v303, %v303
    %v320 = vpack.c.bf16 %v304, %v304
    %v321 = vpack.c.bf16 %v305, %v305
    %v322 = vpack.c.bf16 %v306, %v306
    %v323 = vpack.c.bf16 %v307, %v307
    %324 = vset.pattern.permute.xlu0 1
    %325 = vperm.xlu0 %324, %v28
    %v326 = vpop.permute.xlu0 %325
    %v329 = vunpack.c.l.s4 839922192
    %v330 = vunpack.c.0.s8 %v329
    %v331 = vperm.slane %v326, %v330
    %332 = vset.pattern.permute.xlu0 1
    %333 = vperm.xlu0 %332, %v29
    %v334 = vpop.permute.xlu0 %333
    %v337 = vunpack.c.l.s4 839922192
    %v338 = vunpack.c.0.s8 %v337
    %v339 = vperm.slane %v334, %v338
    %340 = vset.pattern.permute.xlu0 1
    %341 = vperm.xlu0 %340, %v30
    %v342 = vpop.permute.xlu0 %341
    %v345 = vunpack.c.l.s4 839922192
    %v346 = vunpack.c.0.s8 %v345
    %v347 = vperm.slane %v342, %v346
    %348 = vset.pattern.permute.xlu0 1
    %349 = vperm.xlu0 %348, %v31
    %v350 = vpop.permute.xlu0 %349
    %v353 = vunpack.c.l.s4 839922192
    %v354 = vunpack.c.0.s8 %v353
    %v355 = vperm.slane %v350, %v354
    %356 = vset.pattern.permute.xlu0 1
    %357 = vperm.xlu0 %356, %v32
    %v358 = vpop.permute.xlu0 %357
    %v361 = vunpack.c.l.s4 839922192
    %v362 = vunpack.c.0.s8 %v361
    %v363 = vperm.slane %v358, %v362
    %364 = vset.pattern.permute.xlu0 1
    %365 = vperm.xlu0 %364, %v33
    %v366 = vpop.permute.xlu0 %365
    %v369 = vunpack.c.l.s4 839922192
    %v370 = vunpack.c.0.s8 %v369
    %v371 = vperm.slane %v366, %v370
    %372 = vset.pattern.permute.xlu0 1
    %373 = vperm.xlu0 %372, %v34
    %v374 = vpop.permute.xlu0 %373
    %v377 = vunpack.c.l.s4 839922192
    %v378 = vunpack.c.0.s8 %v377
    %v379 = vperm.slane %v374, %v378
    %380 = vset.pattern.permute.xlu0 1
    %381 = vperm.xlu0 %380, %v35
    %v382 = vpop.permute.xlu0 %381
    %v385 = vunpack.c.l.s4 839922192
    %v386 = vunpack.c.0.s8 %v385
    %v387 = vperm.slane %v382, %v386
    %388 = vset.pattern.permute.xlu0 1
    %389 = vperm.xlu0 %388, %v36
    %v390 = vpop.permute.xlu0 %389
    %v393 = vunpack.c.l.s4 839922192
    %v394 = vunpack.c.0.s8 %v393
    %v395 = vperm.slane %v390, %v394
    %396 = vset.pattern.permute.xlu0 1
    %397 = vperm.xlu0 %396, %v37
    %v398 = vpop.permute.xlu0 %397
    %v401 = vunpack.c.l.s4 839922192
    %v402 = vunpack.c.0.s8 %v401
    %v403 = vperm.slane %v398, %v402
    %404 = vset.pattern.permute.xlu0 1
    %405 = vperm.xlu0 %404, %v38
    %v406 = vpop.permute.xlu0 %405
    %v409 = vunpack.c.l.s4 839922192
    %v410 = vunpack.c.0.s8 %v409
    %v411 = vperm.slane %v406, %v410
    %412 = vset.pattern.permute.xlu0 1
    %413 = vperm.xlu0 %412, %v39
    %v414 = vpop.permute.xlu0 %413
    %v417 = vunpack.c.l.s4 839922192
    %v418 = vunpack.c.0.s8 %v417
    %v419 = vperm.slane %v414, %v418
    %420 = vset.pattern.permute.xlu0 1
    %421 = vperm.xlu0 %420, %v40
    %v422 = vpop.permute.xlu0 %421
    %v425 = vunpack.c.l.s4 839922192
    %v426 = vunpack.c.0.s8 %v425
    %v427 = vperm.slane %v422, %v426
    %428 = vset.pattern.permute.xlu0 1
    %429 = vperm.xlu0 %428, %v41
    %v430 = vpop.permute.xlu0 %429
    %v433 = vunpack.c.l.s4 839922192
    %v434 = vunpack.c.0.s8 %v433
    %v435 = vperm.slane %v430, %v434
    %436 = vset.pattern.permute.xlu0 1
    %437 = vperm.xlu0 %436, %v42
    %v438 = vpop.permute.xlu0 %437
    %v441 = vunpack.c.l.s4 839922192
    %v442 = vunpack.c.0.s8 %v441
    %v443 = vperm.slane %v438, %v442
    %444 = vset.pattern.permute.xlu0 1
    %445 = vperm.xlu0 %444, %v43
    %v446 = vpop.permute.xlu0 %445
    %v449 = vunpack.c.l.s4 839922192
    %v450 = vunpack.c.0.s8 %v449
    %v451 = vperm.slane %v446, %v450
    %v452 = vshrl.u32 %v126, 16
    %v453 = vpack.i.b16 %v452, %v452
    %v455 = vperm.slane %v453, 0
    %v456 = vunpack.c.l.bf16 %v331
    %v457 = vunpack.c.l.bf16 %v339
    %v458 = vunpack.c.l.bf16 %v347
    %v459 = vunpack.c.l.bf16 %v355
    %v460 = vunpack.c.l.bf16 %v363
    %v461 = vunpack.c.l.bf16 %v371
    %v462 = vunpack.c.l.bf16 %v379
    %v463 = vunpack.c.l.bf16 %v387
    %v464 = vunpack.c.l.bf16 %v395
    %v465 = vunpack.c.l.bf16 %v403
    %v466 = vunpack.c.l.bf16 %v411
    %v467 = vunpack.c.l.bf16 %v419
    %v468 = vunpack.c.l.bf16 %v427
    %v469 = vunpack.c.l.bf16 %v435
    %v470 = vunpack.c.l.bf16 %v443
    %v471 = vunpack.c.l.bf16 %v451
    %v472 = vunpack.c.l.bf16 %v455
    %v473 = vmul.f32 %v456, %v472
    %v474 = vmul.f32 %v457, %v472
    %v475 = vmul.f32 %v458, %v472
    %v476 = vmul.f32 %v459, %v472
    %v477 = vmul.f32 %v460, %v472
    %v478 = vmul.f32 %v461, %v472
    %v479 = vmul.f32 %v462, %v472
    %v480 = vmul.f32 %v463, %v472
    %v481 = vmul.f32 %v464, %v472
    %v482 = vmul.f32 %v465, %v472
    %v483 = vmul.f32 %v466, %v472
    %v484 = vmul.f32 %v467, %v472
    %v485 = vmul.f32 %v468, %v472
    %v486 = vmul.f32 %v469, %v472
    %v487 = vmul.f32 %v470, %v472
    %v488 = vmul.f32 %v471, %v472
    %v489 = vpack.c.bf16 %v473, %v473
    %v490 = vpack.c.bf16 %v474, %v474
    %v491 = vpack.c.bf16 %v475, %v475
    %v492 = vpack.c.bf16 %v476, %v476
    %v493 = vpack.c.bf16 %v477, %v477
    %v494 = vpack.c.bf16 %v478, %v478
    %v495 = vpack.c.bf16 %v479, %v479
    %v496 = vpack.c.bf16 %v480, %v480
    %v497 = vpack.c.bf16 %v481, %v481
    %v498 = vpack.c.bf16 %v482, %v482
    %v499 = vpack.c.bf16 %v483, %v483
    %v500 = vpack.c.bf16 %v484, %v484
    %v501 = vpack.c.bf16 %v485, %v485
    %v502 = vpack.c.bf16 %v486, %v486
    %v503 = vpack.c.bf16 %v487, %v487
    %v504 = vpack.c.bf16 %v488, %v488
    %v505 = vunpack.c.l.bf16 %v308
    %v506 = vunpack.c.l.bf16 %v309
    %v507 = vunpack.c.l.bf16 %v310
    %v508 = vunpack.c.l.bf16 %v311
    %v509 = vunpack.c.l.bf16 %v312
    %v510 = vunpack.c.l.bf16 %v313
    %v511 = vunpack.c.l.bf16 %v314
    %v512 = vunpack.c.l.bf16 %v315
    %v513 = vunpack.c.l.bf16 %v316
    %v514 = vunpack.c.l.bf16 %v317
    %v515 = vunpack.c.l.bf16 %v318
    %v516 = vunpack.c.l.bf16 %v319
    %v517 = vunpack.c.l.bf16 %v320
    %v518 = vunpack.c.l.bf16 %v321
    %v519 = vunpack.c.l.bf16 %v322
    %v520 = vunpack.c.l.bf16 %v323
    %v521 = vunpack.c.l.bf16 %v489
    %v522 = vunpack.c.l.bf16 %v490
    %v523 = vunpack.c.l.bf16 %v491
    %v524 = vunpack.c.l.bf16 %v492
    %v525 = vunpack.c.l.bf16 %v493
    %v526 = vunpack.c.l.bf16 %v494
    %v527 = vunpack.c.l.bf16 %v495
    %v528 = vunpack.c.l.bf16 %v496
    %v529 = vunpack.c.l.bf16 %v497
    %v530 = vunpack.c.l.bf16 %v498
    %v531 = vunpack.c.l.bf16 %v499
    %v532 = vunpack.c.l.bf16 %v500
    %v533 = vunpack.c.l.bf16 %v501
    %v534 = vunpack.c.l.bf16 %v502
    %v535 = vunpack.c.l.bf16 %v503
    %v536 = vunpack.c.l.bf16 %v504
    %v537 = vadd.f32 %v505, %v521
    %v538 = vadd.f32 %v506, %v522
    %v539 = vadd.f32 %v507, %v523
    %v540 = vadd.f32 %v508, %v524
    %v541 = vadd.f32 %v509, %v525
    %v542 = vadd.f32 %v510, %v526
    %v543 = vadd.f32 %v511, %v527
    %v544 = vadd.f32 %v512, %v528
    %v545 = vadd.f32 %v513, %v529
    %v546 = vadd.f32 %v514, %v530
    %v547 = vadd.f32 %v515, %v531
    %v548 = vadd.f32 %v516, %v532
    %v549 = vadd.f32 %v517, %v533
    %v550 = vadd.f32 %v518, %v534
    %v551 = vadd.f32 %v519, %v535
    %v552 = vadd.f32 %v520, %v536
    %v553 = vpack.c.bf16 %v537, %v537
    %v554 = vpack.c.bf16 %v538, %v538
    %v555 = vpack.c.bf16 %v539, %v539
    %v556 = vpack.c.bf16 %v540, %v540
    %v557 = vpack.c.bf16 %v541, %v541
    %v558 = vpack.c.bf16 %v542, %v542
    %v559 = vpack.c.bf16 %v543, %v543
    %v560 = vpack.c.bf16 %v544, %v544
    %v561 = vpack.c.bf16 %v545, %v545
    %v562 = vpack.c.bf16 %v546, %v546
    %v563 = vpack.c.bf16 %v547, %v547
    %v564 = vpack.c.bf16 %v548, %v548
    %v565 = vpack.c.bf16 %v549, %v549
    %v566 = vpack.c.bf16 %v550, %v550
    %v567 = vpack.c.bf16 %v551, %v551
    %v568 = vpack.c.bf16 %v552, %v552
    %569 = vset.pattern.permute.xlu0 2
    %570 = vperm.xlu0 %569, %v28
    %v571 = vpop.permute.xlu0 %570
    %v574 = vunpack.c.l.s4 839922192
    %v575 = vunpack.c.0.s8 %v574
    %v576 = vperm.slane %v571, %v575
    %577 = vset.pattern.permute.xlu0 2
    %578 = vperm.xlu0 %577, %v29
    %v579 = vpop.permute.xlu0 %578
    %v582 = vunpack.c.l.s4 839922192
    %v583 = vunpack.c.0.s8 %v582
    %v584 = vperm.slane %v579, %v583
    %585 = vset.pattern.permute.xlu0 2
    %586 = vperm.xlu0 %585, %v30
    %v587 = vpop.permute.xlu0 %586
    %v590 = vunpack.c.l.s4 839922192
    %v591 = vunpack.c.0.s8 %v590
    %v592 = vperm.slane %v587, %v591
    %593 = vset.pattern.permute.xlu0 2
    %594 = vperm.xlu0 %593, %v31
    %v595 = vpop.permute.xlu0 %594
    %v598 = vunpack.c.l.s4 839922192
    %v599 = vunpack.c.0.s8 %v598
    %v600 = vperm.slane %v595, %v599
    %601 = vset.pattern.permute.xlu0 2
    %602 = vperm.xlu0 %601, %v32
    %v603 = vpop.permute.xlu0 %602
    %v606 = vunpack.c.l.s4 839922192
    %v607 = vunpack.c.0.s8 %v606
    %v608 = vperm.slane %v603, %v607
    %609 = vset.pattern.permute.xlu0 2
    %610 = vperm.xlu0 %609, %v33
    %v611 = vpop.permute.xlu0 %610
    %v614 = vunpack.c.l.s4 839922192
    %v615 = vunpack.c.0.s8 %v614
    %v616 = vperm.slane %v611, %v615
    %617 = vset.pattern.permute.xlu0 2
    %618 = vperm.xlu0 %617, %v34
    %v619 = vpop.permute.xlu0 %618
    %v622 = vunpack.c.l.s4 839922192
    %v623 = vunpack.c.0.s8 %v622
    %v624 = vperm.slane %v619, %v623
    %625 = vset.pattern.permute.xlu0 2
    %626 = vperm.xlu0 %625, %v35
    %v627 = vpop.permute.xlu0 %626
    %v630 = vunpack.c.l.s4 839922192
    %v631 = vunpack.c.0.s8 %v630
    %v632 = vperm.slane %v627, %v631
    %633 = vset.pattern.permute.xlu0 2
    %634 = vperm.xlu0 %633, %v36
    %v635 = vpop.permute.xlu0 %634
    %v638 = vunpack.c.l.s4 839922192
    %v639 = vunpack.c.0.s8 %v638
    %v640 = vperm.slane %v635, %v639
    %641 = vset.pattern.permute.xlu0 2
    %642 = vperm.xlu0 %641, %v37
    %v643 = vpop.permute.xlu0 %642
    %v646 = vunpack.c.l.s4 839922192
    %v647 = vunpack.c.0.s8 %v646
    %v648 = vperm.slane %v643, %v647
    %649 = vset.pattern.permute.xlu0 2
    %650 = vperm.xlu0 %649, %v38
    %v651 = vpop.permute.xlu0 %650
    %v654 = vunpack.c.l.s4 839922192
    %v655 = vunpack.c.0.s8 %v654
    %v656 = vperm.slane %v651, %v655
    %657 = vset.pattern.permute.xlu0 2
    %658 = vperm.xlu0 %657, %v39
    %v659 = vpop.permute.xlu0 %658
    %v662 = vunpack.c.l.s4 839922192
    %v663 = vunpack.c.0.s8 %v662
    %v664 = vperm.slane %v659, %v663
    %665 = vset.pattern.permute.xlu0 2
    %666 = vperm.xlu0 %665, %v40
    %v667 = vpop.permute.xlu0 %666
    %v670 = vunpack.c.l.s4 839922192
    %v671 = vunpack.c.0.s8 %v670
    %v672 = vperm.slane %v667, %v671
    %673 = vset.pattern.permute.xlu0 2
    %674 = vperm.xlu0 %673, %v41
    %v675 = vpop.permute.xlu0 %674
    %v678 = vunpack.c.l.s4 839922192
    %v679 = vunpack.c.0.s8 %v678
    %v680 = vperm.slane %v675, %v679
    %681 = vset.pattern.permute.xlu0 2
    %682 = vperm.xlu0 %681, %v42
    %v683 = vpop.permute.xlu0 %682
    %v686 = vunpack.c.l.s4 839922192
    %v687 = vunpack.c.0.s8 %v686
    %v688 = vperm.slane %v683, %v687
    %689 = vset.pattern.permute.xlu0 2
    %690 = vperm.xlu0 %689, %v43
    %v691 = vpop.permute.xlu0 %690
    %v694 = vunpack.c.l.s4 839922192
    %v695 = vunpack.c.0.s8 %v694
    %v696 = vperm.slane %v691, %v695
    %v697 = vperm.slane %v272, 1
    %v698 = vunpack.c.l.bf16 %v576
    %v699 = vunpack.c.l.bf16 %v584
    %v700 = vunpack.c.l.bf16 %v592
    %v701 = vunpack.c.l.bf16 %v600
    %v702 = vunpack.c.l.bf16 %v608
    %v703 = vunpack.c.l.bf16 %v616
    %v704 = vunpack.c.l.bf16 %v624
    %v705 = vunpack.c.l.bf16 %v632
    %v706 = vunpack.c.l.bf16 %v640
    %v707 = vunpack.c.l.bf16 %v648
    %v708 = vunpack.c.l.bf16 %v656
    %v709 = vunpack.c.l.bf16 %v664
    %v710 = vunpack.c.l.bf16 %v672
    %v711 = vunpack.c.l.bf16 %v680
    %v712 = vunpack.c.l.bf16 %v688
    %v713 = vunpack.c.l.bf16 %v696
    %v714 = vunpack.c.l.bf16 %v697
    %v715 = vmul.f32 %v698, %v714
    %v716 = vmul.f32 %v699, %v714
    %v717 = vmul.f32 %v700, %v714
    %v718 = vmul.f32 %v701, %v714
    %v719 = vmul.f32 %v702, %v714
    %v720 = vmul.f32 %v703, %v714
    %v721 = vmul.f32 %v704, %v714
    %v722 = vmul.f32 %v705, %v714
    %v723 = vmul.f32 %v706, %v714
    %v724 = vmul.f32 %v707, %v714
    %v725 = vmul.f32 %v708, %v714
    %v726 = vmul.f32 %v709, %v714
    %v727 = vmul.f32 %v710, %v714
    %v728 = vmul.f32 %v711, %v714
    %v729 = vmul.f32 %v712, %v714
    %v730 = vmul.f32 %v713, %v714
    %v731 = vpack.c.bf16 %v715, %v715
    %v732 = vpack.c.bf16 %v716, %v716
    %v733 = vpack.c.bf16 %v717, %v717
    %v734 = vpack.c.bf16 %v718, %v718
    %v735 = vpack.c.bf16 %v719, %v719
    %v736 = vpack.c.bf16 %v720, %v720
    %v737 = vpack.c.bf16 %v721, %v721
    %v738 = vpack.c.bf16 %v722, %v722
    %v739 = vpack.c.bf16 %v723, %v723
    %v740 = vpack.c.bf16 %v724, %v724
    %v741 = vpack.c.bf16 %v725, %v725
    %v742 = vpack.c.bf16 %v726, %v726
    %v743 = vpack.c.bf16 %v727, %v727
    %v744 = vpack.c.bf16 %v728, %v728
    %v745 = vpack.c.bf16 %v729, %v729
    %v746 = vpack.c.bf16 %v730, %v730
    %v747 = vunpack.c.l.bf16 %v553
    %v748 = vunpack.c.l.bf16 %v554
    %v749 = vunpack.c.l.bf16 %v555
    %v750 = vunpack.c.l.bf16 %v556
    %v751 = vunpack.c.l.bf16 %v557
    %v752 = vunpack.c.l.bf16 %v558
    %v753 = vunpack.c.l.bf16 %v559
    %v754 = vunpack.c.l.bf16 %v560
    %v755 = vunpack.c.l.bf16 %v561
    %v756 = vunpack.c.l.bf16 %v562
    %v757 = vunpack.c.l.bf16 %v563
    %v758 = vunpack.c.l.bf16 %v564
    %v759 = vunpack.c.l.bf16 %v565
    %v760 = vunpack.c.l.bf16 %v566
    %v761 = vunpack.c.l.bf16 %v567
    %v762 = vunpack.c.l.bf16 %v568
    %v763 = vunpack.c.l.bf16 %v731
    %v764 = vunpack.c.l.bf16 %v732
    %v765 = vunpack.c.l.bf16 %v733
    %v766 = vunpack.c.l.bf16 %v734
    %v767 = vunpack.c.l.bf16 %v735
    %v768 = vunpack.c.l.bf16 %v736
    %v769 = vunpack.c.l.bf16 %v737
    %v770 = vunpack.c.l.bf16 %v738
    %v771 = vunpack.c.l.bf16 %v739
    %v772 = vunpack.c.l.bf16 %v740
    %v773 = vunpack.c.l.bf16 %v741
    %v774 = vunpack.c.l.bf16 %v742
    %v775 = vunpack.c.l.bf16 %v743
    %v776 = vunpack.c.l.bf16 %v744
    %v777 = vunpack.c.l.bf16 %v745
    %v778 = vunpack.c.l.bf16 %v746
    %v779 = vadd.f32 %v747, %v763
    %v780 = vadd.f32 %v748, %v764
    %v781 = vadd.f32 %v749, %v765
    %v782 = vadd.f32 %v750, %v766
    %v783 = vadd.f32 %v751, %v767
    %v784 = vadd.f32 %v752, %v768
    %v785 = vadd.f32 %v753, %v769
    %v786 = vadd.f32 %v754, %v770
    %v787 = vadd.f32 %v755, %v771
    %v788 = vadd.f32 %v756, %v772
    %v789 = vadd.f32 %v757, %v773
    %v790 = vadd.f32 %v758, %v774
    %v791 = vadd.f32 %v759, %v775
    %v792 = vadd.f32 %v760, %v776
    %v793 = vadd.f32 %v761, %v777
    %v794 = vadd.f32 %v762, %v778
    %v795 = vpack.c.bf16 %v779, %v779
    %v796 = vpack.c.bf16 %v780, %v780
    %v797 = vpack.c.bf16 %v781, %v781
    %v798 = vpack.c.bf16 %v782, %v782
    %v799 = vpack.c.bf16 %v783, %v783
    %v800 = vpack.c.bf16 %v784, %v784
    %v801 = vpack.c.bf16 %v785, %v785
    %v802 = vpack.c.bf16 %v786, %v786
    %v803 = vpack.c.bf16 %v787, %v787
    %v804 = vpack.c.bf16 %v788, %v788
    %v805 = vpack.c.bf16 %v789, %v789
    %v806 = vpack.c.bf16 %v790, %v790
    %v807 = vpack.c.bf16 %v791, %v791
    %v808 = vpack.c.bf16 %v792, %v792
    %v809 = vpack.c.bf16 %v793, %v793
    %v810 = vpack.c.bf16 %v794, %v794
    %812 = vset.pattern.permute.xlu0 0
    %813 = vperm.xlu0 %812, %v44
    %v814 = vpop.permute.xlu0 %813
    %v817 = vunpack.c.l.s4 839922192
    %v818 = vunpack.c.0.s8 %v817
    %v819 = vperm.slane %v814, %v818
    %821 = vset.pattern.permute.xlu0 0
    %822 = vperm.xlu0 %821, %v45
    %v823 = vpop.permute.xlu0 %822
    %v826 = vunpack.c.l.s4 839922192
    %v827 = vunpack.c.0.s8 %v826
    %v828 = vperm.slane %v823, %v827
    %830 = vset.pattern.permute.xlu0 0
    %831 = vperm.xlu0 %830, %v46
    %v832 = vpop.permute.xlu0 %831
    %v835 = vunpack.c.l.s4 839922192
    %v836 = vunpack.c.0.s8 %v835
    %v837 = vperm.slane %v832, %v836
    %839 = vset.pattern.permute.xlu0 0
    %840 = vperm.xlu0 %839, %v47
    %v841 = vpop.permute.xlu0 %840
    %v844 = vunpack.c.l.s4 839922192
    %v845 = vunpack.c.0.s8 %v844
    %v846 = vperm.slane %v841, %v845
    %848 = vset.pattern.permute.xlu0 0
    %849 = vperm.xlu0 %848, %v48
    %v850 = vpop.permute.xlu0 %849
    %v853 = vunpack.c.l.s4 839922192
    %v854 = vunpack.c.0.s8 %v853
    %v855 = vperm.slane %v850, %v854
    %857 = vset.pattern.permute.xlu0 0
    %858 = vperm.xlu0 %857, %v49
    %v859 = vpop.permute.xlu0 %858
    %v862 = vunpack.c.l.s4 839922192
    %v863 = vunpack.c.0.s8 %v862
    %v864 = vperm.slane %v859, %v863
    %866 = vset.pattern.permute.xlu0 0
    %867 = vperm.xlu0 %866, %v50
    %v868 = vpop.permute.xlu0 %867
    %v871 = vunpack.c.l.s4 839922192
    %v872 = vunpack.c.0.s8 %v871
    %v873 = vperm.slane %v868, %v872
    %875 = vset.pattern.permute.xlu0 0
    %876 = vperm.xlu0 %875, %v51
    %v877 = vpop.permute.xlu0 %876
    %v880 = vunpack.c.l.s4 839922192
    %v881 = vunpack.c.0.s8 %v880
    %v882 = vperm.slane %v877, %v881
    %884 = vset.pattern.permute.xlu0 0
    %885 = vperm.xlu0 %884, %v52
    %v886 = vpop.permute.xlu0 %885
    %v889 = vunpack.c.l.s4 839922192
    %v890 = vunpack.c.0.s8 %v889
    %v891 = vperm.slane %v886, %v890
    %893 = vset.pattern.permute.xlu0 0
    %894 = vperm.xlu0 %893, %v53
    %v895 = vpop.permute.xlu0 %894
    %v898 = vunpack.c.l.s4 839922192
    %v899 = vunpack.c.0.s8 %v898
    %v900 = vperm.slane %v895, %v899
    %902 = vset.pattern.permute.xlu0 0
    %903 = vperm.xlu0 %902, %v54
    %v904 = vpop.permute.xlu0 %903
    %v907 = vunpack.c.l.s4 839922192
    %v908 = vunpack.c.0.s8 %v907
    %v909 = vperm.slane %v904, %v908
    %911 = vset.pattern.permute.xlu0 0
    %912 = vperm.xlu0 %911, %v55
    %v913 = vpop.permute.xlu0 %912
    %v916 = vunpack.c.l.s4 839922192
    %v917 = vunpack.c.0.s8 %v916
    %v918 = vperm.slane %v913, %v917
    %920 = vset.pattern.permute.xlu0 0
    %921 = vperm.xlu0 %920, %v56
    %v922 = vpop.permute.xlu0 %921
    %v925 = vunpack.c.l.s4 839922192
    %v926 = vunpack.c.0.s8 %v925
    %v927 = vperm.slane %v922, %v926
    %929 = vset.pattern.permute.xlu0 0
    %930 = vperm.xlu0 %929, %v57
    %v931 = vpop.permute.xlu0 %930
    %v934 = vunpack.c.l.s4 839922192
    %v935 = vunpack.c.0.s8 %v934
    %v936 = vperm.slane %v931, %v935
    %938 = vset.pattern.permute.xlu0 0
    %939 = vperm.xlu0 %938, %v58
    %v940 = vpop.permute.xlu0 %939
    %v943 = vunpack.c.l.s4 839922192
    %v944 = vunpack.c.0.s8 %v943
    %v945 = vperm.slane %v940, %v944
    %947 = vset.pattern.permute.xlu0 0
    %948 = vperm.xlu0 %947, %v59
    %v949 = vpop.permute.xlu0 %948
    %v952 = vunpack.c.l.s4 839922192
    %v953 = vunpack.c.0.s8 %v952
    %v954 = vperm.slane %v949, %v953
    %v955 = vunpack.c.l.bf16 %v795
    %v956 = vunpack.c.l.bf16 %v796
    %v957 = vunpack.c.l.bf16 %v797
    %v958 = vunpack.c.l.bf16 %v798
    %v959 = vunpack.c.l.bf16 %v799
    %v960 = vunpack.c.l.bf16 %v800
    %v961 = vunpack.c.l.bf16 %v801
    %v962 = vunpack.c.l.bf16 %v802
    %v963 = vunpack.c.l.bf16 %v803
    %v964 = vunpack.c.l.bf16 %v804
    %v965 = vunpack.c.l.bf16 %v805
    %v966 = vunpack.c.l.bf16 %v806
    %v967 = vunpack.c.l.bf16 %v807
    %v968 = vunpack.c.l.bf16 %v808
    %v969 = vunpack.c.l.bf16 %v809
    %v970 = vunpack.c.l.bf16 %v810
    %v971 = vunpack.c.l.bf16 %v819
    %v972 = vunpack.c.l.bf16 %v828
    %v973 = vunpack.c.l.bf16 %v837
    %v974 = vunpack.c.l.bf16 %v846
    %v975 = vunpack.c.l.bf16 %v855
    %v976 = vunpack.c.l.bf16 %v864
    %v977 = vunpack.c.l.bf16 %v873
    %v978 = vunpack.c.l.bf16 %v882
    %v979 = vunpack.c.l.bf16 %v891
    %v980 = vunpack.c.l.bf16 %v900
    %v981 = vunpack.c.l.bf16 %v909
    %v982 = vunpack.c.l.bf16 %v918
    %v983 = vunpack.c.l.bf16 %v927
    %v984 = vunpack.c.l.bf16 %v936
    %v985 = vunpack.c.l.bf16 %v945
    %v986 = vunpack.c.l.bf16 %v954
    %v987 = vadd.f32 %v955, %v971
    %v988 = vadd.f32 %v956, %v972
    %v989 = vadd.f32 %v957, %v973
    %v990 = vadd.f32 %v958, %v974
    %v991 = vadd.f32 %v959, %v975
    %v992 = vadd.f32 %v960, %v976
    %v993 = vadd.f32 %v961, %v977
    %v994 = vadd.f32 %v962, %v978
    %v995 = vadd.f32 %v963, %v979
    %v996 = vadd.f32 %v964, %v980
    %v997 = vadd.f32 %v965, %v981
    %v998 = vadd.f32 %v966, %v982
    %v999 = vadd.f32 %v967, %v983
    %v1000 = vadd.f32 %v968, %v984
    %v1001 = vadd.f32 %v969, %v985
    %v1002 = vadd.f32 %v970, %v986
    %v1003 = vpack.c.bf16 %v987, %v987
    %v1004 = vpack.c.bf16 %v988, %v988
    %v1005 = vpack.c.bf16 %v989, %v989
    %v1006 = vpack.c.bf16 %v990, %v990
    %v1007 = vpack.c.bf16 %v991, %v991
    %v1008 = vpack.c.bf16 %v992, %v992
    %v1009 = vpack.c.bf16 %v993, %v993
    %v1010 = vpack.c.bf16 %v994, %v994
    %v1011 = vpack.c.bf16 %v995, %v995
    %v1012 = vpack.c.bf16 %v996, %v996
    %v1013 = vpack.c.bf16 %v997, %v997
    %v1014 = vpack.c.bf16 %v998, %v998
    %v1015 = vpack.c.bf16 %v999, %v999
    %v1016 = vpack.c.bf16 %v1000, %v1000
    %v1017 = vpack.c.bf16 %v1001, %v1001
    %v1018 = vpack.c.bf16 %v1002, %v1002
    %v1019 = vunpack.c.l.bf16 %v1003
    %v1020 = vunpack.c.l.bf16 %v1004
    %v1021 = vunpack.c.l.bf16 %v1005
    %v1022 = vunpack.c.l.bf16 %v1006
    %v1023 = vunpack.c.l.bf16 %v1007
    %v1024 = vunpack.c.l.bf16 %v1008
    %v1025 = vunpack.c.l.bf16 %v1009
    %v1026 = vunpack.c.l.bf16 %v1010
    %v1027 = vunpack.c.l.bf16 %v1011
    %v1028 = vunpack.c.l.bf16 %v1012
    %v1029 = vunpack.c.l.bf16 %v1013
    %v1030 = vunpack.c.l.bf16 %v1014
    %v1031 = vunpack.c.l.bf16 %v1015
    %v1032 = vunpack.c.l.bf16 %v1016
    %v1033 = vunpack.c.l.bf16 %v1017
    %v1034 = vunpack.c.l.bf16 %v1018
    %v1035 = vmax.f32 %v1019, 0.0
    %v1036 = vmax.f32 %v1020, 0.0
    %v1037 = vmax.f32 %v1021, 0.0
    %v1038 = vmax.f32 %v1022, 0.0
    %v1039 = vmax.f32 %v1023, 0.0
    %v1040 = vmax.f32 %v1024, 0.0
    %v1041 = vmax.f32 %v1025, 0.0
    %v1042 = vmax.f32 %v1026, 0.0
    %v1043 = vmax.f32 %v1027, 0.0
    %v1044 = vmax.f32 %v1028, 0.0
    %v1045 = vmax.f32 %v1029, 0.0
    %v1046 = vmax.f32 %v1030, 0.0
    %v1047 = vmax.f32 %v1031, 0.0
    %v1048 = vmax.f32 %v1032, 0.0
    %v1049 = vmax.f32 %v1033, 0.0
    %v1050 = vmax.f32 %v1034, 0.0
    %v1051 = vpack.c.bf16 %v1036, %v1035
    %v1052 = vpack.c.bf16 %v1038, %v1037
    %v1053 = vpack.c.bf16 %v1040, %v1039
    %v1054 = vpack.c.bf16 %v1042, %v1041
    %v1055 = vpack.c.bf16 %v1044, %v1043
    %v1056 = vpack.c.bf16 %v1046, %v1045
    %v1057 = vpack.c.bf16 %v1048, %v1047
    %v1058 = vpack.c.bf16 %v1050, %v1049
    %v1067 = vunpack.c.l.b16 %v60
    %v1068 = vunpack.c.l.b16 %v61
    %v1069 = vunpack.c.l.b16 %v62
    %v1070 = vunpack.c.l.b16 %v63
    %v1071 = vunpack.c.l.b16 %v64
    %v1072 = vunpack.c.l.b16 %v65
    %v1073 = vunpack.c.l.b16 %v66
    %v1074 = vunpack.c.l.b16 %v67
    %v1075 = vpack.c.b16 %v1068, %v1067
    %v1076 = vpack.c.b16 %v1070, %v1069
    %v1077 = vpack.c.b16 %v1072, %v1071
    %v1078 = vpack.c.b16 %v1074, %v1073
    %1083 = vmatpush.bf16.msra.mxu0 %v1058
    %1084 = vmatpush.bf16.msra.mxu0 %v1057
    %1085 = vmatpush.bf16.msra.mxu0 %v1056
    %1086 = vmatpush.bf16.msra.mxu0 %v1055
    %1087 = vmatpush.bf16.msra.mxu0 %v1054
    %1088 = vmatpush.bf16.msra.mxu0 %v1053
    %1089 = vmatpush.bf16.msra.mxu0 %v1052
    %1090 = vmatpush.bf16.msra.mxu0 %v1051
    %1091 = vmatmul.bf16.gmra.mxu0 %v1075
    %v1092 = vpop.f32.mrf.mxu0
    %v1093 = vadd.f32 %v79, %v1092
    %v1094 = vpop.f32.mrf.mxu0
    %v1095 = vadd.f32 %v84, %v1094
    %1096 = vmatmul.bf16.gmra.mxu0 %v1076
    %v1097 = vpop.f32.mrf.mxu0
    %v1098 = vadd.f32 %v89, %v1097
    %v1099 = vpop.f32.mrf.mxu0
    %v1100 = vadd.f32 %v94, %v1099
    %1101 = vmatmul.bf16.gmra.mxu0 %v1077
    %v1102 = vpop.f32.mrf.mxu0
    %v1103 = vadd.f32 %v99, %v1102
    %v1104 = vpop.f32.mrf.mxu0
    %v1105 = vadd.f32 %v104, %v1104
    %1106 = vmatmul.bf16.gmra.mxu0 %v1078
    %v1107 = vpop.f32.mrf.mxu0
    %v1108 = vadd.f32 %v109, %v1107
    %v1109 = vpop.f32.mrf.mxu0
    %v1110 = vadd.f32 %v114, %v1109
    %1111 = vdwg.mxu0
    %v1112 = vmax.f32 %v1093, 0.0
    %v1113 = vmax.f32 %v1095, 0.0
    %v1114 = vmax.f32 %v1098, 0.0
    %v1115 = vmax.f32 %v1100, 0.0
    %v1116 = vmax.f32 %v1103, 0.0
    %v1117 = vmax.f32 %v1105, 0.0
    %v1118 = vmax.f32 %v1108, 0.0
    %v1119 = vmax.f32 %v1110, 0.0
    %1121 = vset.pattern.permute.xlu0 0
    %1122 = vperm.xlu0 %1121, %v116
    %v1123 = vpop.permute.xlu0 %1122
    %1126 = vset.pattern.permute.xlu0 0
    %1127 = vperm.xlu0 %1126, %v117
    %v1128 = vpop.permute.xlu0 %1127
    %1131 = vset.pattern.permute.xlu0 0
    %1132 = vperm.xlu0 %1131, %v118
    %v1133 = vpop.permute.xlu0 %1132
    %1136 = vset.pattern.permute.xlu0 0
    %1137 = vperm.xlu0 %1136, %v119
    %v1138 = vpop.permute.xlu0 %1137
    %1141 = vset.pattern.permute.xlu0 0
    %1142 = vperm.xlu0 %1141, %v120
    %v1143 = vpop.permute.xlu0 %1142
    %1146 = vset.pattern.permute.xlu0 0
    %1147 = vperm.xlu0 %1146, %v121
    %v1148 = vpop.permute.xlu0 %1147
    %1151 = vset.pattern.permute.xlu0 0
    %1152 = vperm.xlu0 %1151, %v122
    %v1153 = vpop.permute.xlu0 %1152
    %1156 = vset.pattern.permute.xlu0 0
    %1157 = vperm.xlu0 %1156, %v123
    %v1158 = vpop.permute.xlu0 %1157
    %v1160 = vmul.f32 %v1112, %v1123
    %v1161 = vmul.f32 %v1113, %v1128
    %v1162 = vmul.f32 %v1114, %v1133
    %v1163 = vmul.f32 %v1115, %v1138
    %v1164 = vmul.f32 %v1116, %v1143
    %v1165 = vmul.f32 %v1117, %v1148
    %v1166 = vmul.f32 %v1118, %v1153
    %v1167 = vmul.f32 %v1119, %v1158
    %v1168 = vadd.f32 %v1160, %v1161
    %v1169 = vadd.f32 %v1168, %v1162
    %v1170 = vadd.f32 %v1169, %v1163
    %v1171 = vadd.f32 %v1170, %v1164
    %v1172 = vadd.f32 %v1171, %v1165
    %v1173 = vadd.f32 %v1172, %v1166
    %v1174 = vadd.f32 %v1173, %v1167
    %v1175 = vrot.slane %v1174, 4
    %v1176 = vadd.f32 %v1174, %v1175
    %v1177 = vrot.slane %v1176, 2
    %v1178 = vadd.f32 %v1176, %v1177
    %v1179 = vrot.slane %v1178, 1
    %v1180 = vadd.f32 %v1178, %v1179
    %v1181 = vstv %s124
    %v1182 = vadd.f32 %v1180, %v1181
    %v1183 = vxor.u32 %v1182, 2147483648
    %v1184 = vmul.f32 %v1183, 1.442695
    %v1185 = vpow.pop %v1184
    %v1186 = vadd.f32 %v1185, 1.0
    %v1187 = vrcp.pop %v1186
    %v1188 = vmul.f32 %v1186, %v1187
    %v1189 = vsub.f32 1.0, %v1188
    %v1190 = vmul.f32 %v1187, %v1189
    %v1191 = vadd.f32 %v1187, %v1190
    %vm1192 = vweird.f32 %v1186
    %vm1193 = vweird.f32 %v1187
    %vm1194 = vmor %vm1192, %vm1193
    %v1195 = vsel %vm1194, %v1187, %v1191
    %v1196 = vand.u32 2147483647, %v1186
    %vm1197 = vcmp.eq.f32.partialorder %v1196, 8.507059e+37
    %v1198 = vand.u32 %v1186, 2147483648
    %v1199 = vor.u32 1.1754944e-38, %v1198
    %v1200 = vsel %vm1197, %v1199, %v1195
    %v1201 = vmul.f32 1.0, %v1200
    %1202 = vst [vmem:[#allocation3] sm:$0x1] %v1201
    // Predicated region
    $region30: #{tpu_custom_call.1} parent=1 // pred_check
      _
    $region31: #{tpu_custom_call.1} parent=1 // pred_check_branch
      %1204 = sbr.rel (0) target = $region33
    $region32: #{tpu_custom_call.1} parent=1 // pred_region
      %1206 = vsyncadd [#allocation4], 0
      %s1208 = sshll.u32 [#allocation3], 4
      %s1209 = int_to_ptr.vmem [resolvable:$true] %s1208
      %s1210 = sshll.u32 %s7, 4
      %s1211 = int_to_ptr.hbm [resolvable:$true] %s1210
      %1213 = dma.vmem_to_hbm [thread:$0]  %s1209, 16, %s1211, [#allocation4]
    $region33: #{tpu_custom_call.1} parent=1 // pred_fallthru
      _
    // Predicated region
    $region34: #{tpu_custom_call.1} parent=1 // pred_check
      _
    $region35: #{tpu_custom_call.1} parent=1 // pred_check_branch
      %1215 = sbr.rel (0) target = $region37
    $region36: #{tpu_custom_call.1} parent=1 // pred_region
      %1217 = dma.done [#allocation4], 16
    $region37: #{tpu_custom_call.1} parent=1 // pred_fallthru
      _
    %1218 = vsyncpa [#allocation4], 1

</llo_original>
